<compile_context>
chip_gen: v7x
topology: tpu7x:2x2x1
jax: 0.10.0
libtpu: 0.0.40
codegen_flags: <defaults>
</compile_context>

<pallas_src>
import math

import jax
import jax.numpy as jnp
from jax.experimental import pallas as pl
from jax.experimental.pallas import tpu as pltpu

_LANE = 128


def _bias_add_kernel(x_ref, b_ref, o_ref):
    # x_ref / o_ref: (tile_r, tile_h) VMEM tiles; b_ref: (1, tile_h), broadcast over rows.
    o_ref[...] = x_ref[...] + b_ref[...]


def _tpu_generation() -> int:
    """Best-effort TPU generation from the device kind string (0 if unknown)."""
    try:
        kind = jax.devices()[0].device_kind.lower()
    except Exception:
        return 0
    for g in (7, 6, 5, 4):
        if "v%d" % g in kind:
            return g
    return 0


def bias_add(x: jax.Array, b: jax.Array, *,
             target_tile_bytes: int | None = None,
             donate: bool = False) -> jax.Array:
    """x: [..., hidden], b: [hidden] -> x + b (broadcast over leading dims).

    donate=True aliases the output onto x's HBM buffer (x is consumed); leave
    False unless the caller actually donates x, otherwise XLA inserts a
    defensive full-tensor copy.

    NOTE: b is cast to x.dtype before the add (both are f32 in the reference
    module, so this matches PyTorch exactly there).
    """
    orig_shape = x.shape
    hidden = orig_shape[-1]
    rows = math.prod(orig_shape[:-1])  # == 1 for 1-D x

    b = b.astype(x.dtype)

    gen = _tpu_generation()
    if target_tile_bytes is None:
        # ~4 MiB on v6e/v7x (amortizes the ~0.35 us/grid-step pipeline overhead;
        # (in+out) x 2 buffers = 16 MiB fits the 32 MiB scoped VMEM limit set
        # below). Keep ~2 MiB on v5e/older whose scoped default is 16 MiB.
        target_tile_bytes = (4 * 1024 * 1024) if gen >= 6 else (2 * 1024 * 1024)

    itemsize = jnp.dtype(x.dtype).itemsize
    # Native sublane packing: 32 sublanes/vreg for 1-byte, 16 for 2-byte, 8 for 4-byte.
    sub = 32 if itemsize == 1 else (16 if itemsize == 2 else 8)

    # --- Lane-dense repack (biggest single lever for hidden < 128). ---------
    x2d = x.reshape(rows, hidden)
    packed = False
    pack_rows = rows
    if 0 < hidden < _LANE and _LANE % hidden == 0 and rows > 0:
        pack = _LANE // hidden
        pack_rows = pl.cdiv(rows, pack) * pack
        if pack_rows != rows:
            # Pad a few rows so the repack stays lane-dense (full 128-lane stores);
            # the tail is sliced off after the kernel.
            x2d = jnp.pad(x2d, ((0, pack_rows - rows), (0, 0)))
        work_rows = pack_rows // pack
        work_hidden = _LANE
        x2d = x2d.reshape(work_rows, work_hidden)
        b2d = jnp.tile(b.reshape(1, hidden), (1, pack))  # one-time wrapper glue
        packed = True
    else:
        work_rows = rows
        work_hidden = hidden
        b2d = b.reshape(1, hidden)

    # --- Hidden (lane) tiling: prefer full contiguous rows. -----------------
    # Only split the lane axis when even a minimum-height (sub-row) tile would
    # overflow the budget, and only when hidden is a 128-multiple (block rule).
    # When splitting, take the largest fitting 128-multiple.
    if work_hidden % _LANE == 0 and sub * work_hidden * itemsize > target_tile_bytes:
        tile_h = max(_LANE, (target_tile_bytes // (sub * itemsize)) // _LANE * _LANE)
        tile_h = min(tile_h, work_hidden)
    else:
        tile_h = work_hidden  # full extent -> exempt from the 128-divisibility rule

    # --- Row (sublane) tiling: ~target_tile_bytes per tile. -----------------
    bytes_per_row = max(tile_h * itemsize, 1)
    tile_r = max(sub, target_tile_bytes // bytes_per_row)
    tile_r = max(sub, (tile_r // sub) * sub)  # keep sublane-aligned

    # v7x has 2 TensorCores: guarantee >= 2 balanced row tiles so both cores get
    # work (a 1-tile grid would idle one core). 1-TC chips (v5e/v6e) unaffected.
    if gen >= 7 and work_rows >= 2 * sub:
        half = max(sub, (pl.cdiv(work_rows, 2) // sub) * sub)
        tile_r = min(tile_r, half)

    if work_rows <= tile_r:
        tile_r = max(work_rows, 1)  # single full-extent block; divisibility-exempt

    grid = (pl.cdiv(work_rows, tile_r), pl.cdiv(work_hidden, tile_h))

    out = pl.pallas_call(
        _bias_add_kernel,
        out_shape=jax.ShapeDtypeStruct((work_rows, work_hidden), x.dtype),
        grid=grid,
        in_specs=[
            pl.BlockSpec((tile_r, tile_h), lambda i, j: (i, j)),
            pl.BlockSpec((1, tile_h), lambda i, j: (0, j)),  # bias: VMEM-resident per column tile
        ],
        out_specs=pl.BlockSpec((tile_r, tile_h), lambda i, j: (i, j)),
        # Opt-in in-place update: only alias when the caller donates x; otherwise
        # XLA's defensive copy would add a full extra HBM pass to a BW-bound op.
        input_output_aliases=({0: 0} if donate else {}),
        compiler_params=pltpu.CompilerParams(
            dimension_semantics=("parallel", "parallel"),
            # Explicit scoped-VMEM budget: covers the 4 MiB tiles on v6e/v7x
            # (v7x scoped default is 32 MiB, physical 64 MiB) and is harmless on v5e.
            vmem_limit_bytes=32 * 1024 * 1024,
        ),
    )(x2d, b2d)

    if packed:
        out = out.reshape(pack_rows, hidden)
        if pack_rows != rows:
            out = out[:rows]
    return out.reshape(orig_shape)


if __name__ == "__main__":
    key = jax.random.PRNGKey(0)
    kx, kb = jax.random.split(key)

    batch, seq, hidden = 2, 8, 32
    x = jax.random.normal(kx, (batch, seq, hidden), dtype=jnp.float32)
    # deterministic "parameter" b (same role as nn.Parameter(torch.tensor(b)))
    b = jax.random.normal(kb, (hidden,), dtype=jnp.float32)

    # correctness reference: plain-JAX broadcasting semantics (== PyTorch x + b)
    ref = x + b
    y = bias_add(x, b)
    jax.block_until_ready(y)
    assert y.shape == x.shape and y.dtype == x.dtype
    assert jnp.allclose(y, ref, atol=1e-6, rtol=1e-6), "mismatch vs reference"

    # ragged-row lane-dense repack path (rows not a multiple of 128 // hidden)
    x2 = jax.random.normal(kx, (3, 5, hidden), dtype=jnp.float32)
    y2 = bias_add(x2, b)
    jax.block_until_ready(y2)
    assert y2.shape == x2.shape
    assert jnp.allclose(y2, x2 + b, atol=1e-6, rtol=1e-6), "mismatch (ragged path)"

    print("KERNEL_OK")
</pallas_src>

<mosaic_0001>
module attributes {stable_mosaic.version = 11 : i64} {
  func.func @_bias_add_kernel(%arg0: i32, %arg1: i32, %arg2: memref<4x128xf32, #tpu.memory_space<vmem>>, %arg3: memref<1x128xf32, #tpu.memory_space<vmem>>, %arg4: memref<4x128xf32, #tpu.memory_space<vmem>>) attributes {dimension_semantics = [#tpu.dimension_semantics<parallel>, #tpu.dimension_semantics<parallel>], iteration_bounds = array<i64: 1, 1>, scalar_prefetch = 0 : i64, scratch_operands = 0 : i64, tpu.core_type = #tpu.core_type<tc>, window_params = [{transform_indices = @transform_0, window_bounds = array<i64: 4, 128>}, {transform_indices = @transform_1, window_bounds = array<i64: 1, 128>}, {transform_indices = @transform_2, window_bounds = array<i64: 4, 128>}]} {
    %c0 = arith.constant 0 : index
    %c0_0 = arith.constant 0 : index
    %0 = vector.load %arg2[%c0, %c0_0] : memref<4x128xf32, #tpu.memory_space<vmem>>, vector<4x128xf32>
    %c0_1 = arith.constant 0 : index
    %c0_2 = arith.constant 0 : index
    %1 = vector.load %arg3[%c0_1, %c0_2] : memref<1x128xf32, #tpu.memory_space<vmem>>, vector<1x128xf32>
    %2 = vector.broadcast %1 : vector<1x128xf32> to vector<4x128xf32>
    %3 = arith.addf %0, %2 : vector<4x128xf32>
    %c0_3 = arith.constant 0 : index
    %c0_4 = arith.constant 0 : index
    %4 = vector.load %arg4[%c0_3, %c0_4] : memref<4x128xf32, #tpu.memory_space<vmem>>, vector<4x128xf32>
    tpu.vector_store %arg4[%c0_3, %c0_4], %3 {strides = array<i32>} : memref<4x128xf32, #tpu.memory_space<vmem>>, vector<4x128xf32>,
    return
  }
  func.func @transform_0(%arg0: i32, %arg1: i32) -> (i32, i32) {
    %c0_i32 = arith.constant 0 : i32
    return %arg0, %arg1 : i32, i32
  }
  func.func @transform_1(%arg0: i32, %arg1: i32) -> (i32, i32) {
    %c0_i32 = arith.constant 0 : i32
    %c0_i32_0 = arith.constant 0 : i32
    return %c0_i32, %arg1 : i32, i32
  }
  func.func @transform_2(%arg0: i32, %arg1: i32) -> (i32, i32) {
    %c0_i32 = arith.constant 0 : i32
    return %arg0, %arg1 : i32, i32
  }
}

</mosaic_0001>

<llo_original>
// kernel: tpu_custom_call.1
$region0: #{tpu_custom_call.1}
  #allocation0 [shape = 'u32[]', space=smem, size = 0x4, offset = 0x4, fixed_abs, tag = 'smem constant byte address 0x4 - core index']
  #allocation1 [shape = 'u32[144,128]{1,0:T(1,128)}', space=vmem, size = 0x12000, scoped, tag = 'internal scratch']
  %s0 = inlined_call_operand.hbm [shape: f32[4,128], index: 0, kind: input, shape index: {}]
  %s1 = inlined_call_operand.vmem [shape: f32[1,128], index: 1, kind: input, shape index: {}]
  %s2 = inlined_call_operand.hbm [shape: f32[4,128], index: 2, kind: output, shape index: {}]
  %s3 = sld [smem:[#allocation0]]
  $region22: #{tpu_custom_call.1} parent=0
    _
  %s5 = ssub.s32 1, %s3
  %s6 = scalar_select 0, %s5, %s3
  $region1: #{tpu_custom_call.1} parent=0
    #allocation2 [shape = 'u8[2048]{0}', space=vmem, size = 0x800, scoped, tag = 'input window, operand 0, single buffered']
    #allocation3 [shape = 's32[1]{0}', space=sflag, size = 0x4, scoped, tag = 'scoped memory for tpu_custom_call.1']
    #allocation4 [shape = 's32[1]{0}', space=sflag, size = 0x4, scoped, tag = 'scoped memory for tpu_custom_call.1']
    #allocation5 [shape = 'u8[2048]{0}', space=vmem, size = 0x800, scoped, tag = 'output window, operand 0, single buffered']
    %7 = vsyncpa [#allocation3], 0
    %8 = vsyncpa [#allocation4], 0
    // Predicated region
    $region2: #{tpu_custom_call.1} parent=1 // pred_check
      _
    $region3: #{tpu_custom_call.1} parent=1 // pred_check_branch
      %10 = sbr.rel (0) target = $region5
    $region4: #{tpu_custom_call.1} parent=1 // pred_region
      %s12 = ssub.s32 64, 64
      %13 = vsyncadd [#allocation3], %s12
      %s15 = sshll.u32 [#allocation2], 4
      %s16 = int_to_ptr.vmem [resolvable:$true] %s15
      %18 = dma.hbm_to_vmem [thread:$0]  %s0, 64, %s16, [#allocation3]
    $region5: #{tpu_custom_call.1} parent=1 // pred_fallthru
      _
    // Predicated region
    $region6: #{tpu_custom_call.1} parent=1 // pred_check
      _
    $region7: #{tpu_custom_call.1} parent=1 // pred_check_branch
      %20 = sbr.rel (0) target = $region9
    $region8: #{tpu_custom_call.1} parent=1 // pred_region
      _
    $region9: #{tpu_custom_call.1} parent=1 // pred_fallthru
      _
    // Predicated region
    $region10: #{tpu_custom_call.1} parent=1 // pred_check
      _
    $region11: #{tpu_custom_call.1} parent=1 // pred_check_branch
      %22 = sbr.rel (0) target = $region13
    $region12: #{tpu_custom_call.1} parent=1 // pred_region
      %23 = dma.done [#allocation3], 64
    $region13: #{tpu_custom_call.1} parent=1 // pred_fallthru
      _
    %v24 = vld [vmem:[#allocation2] sm:$0xf]
    %v25 = vld [vmem:[%s1] sm:$0x1]
    %v27 = vlaneseq
    %v28 = vshrl.u32 %v27, 7
    %v29 = vsub.s32 0, %v28
    %v30 = vrot.slane %v25, %v29
    %v32 = vadd.f32 %v24, %v30
    %33 = vst [vmem:[#allocation5] sm:$0xf] %v32
    // Predicated region
    $region14: #{tpu_custom_call.1} parent=1 // pred_check
      _
    $region15: #{tpu_custom_call.1} parent=1 // pred_check_branch
      %35 = sbr.rel (0) target = $region17
    $region16: #{tpu_custom_call.1} parent=1 // pred_region
      %s37 = ssub.s32 64, 64
      %38 = vsyncadd [#allocation4], %s37
      %s40 = sshll.u32 [#allocation5], 4
      %s41 = int_to_ptr.vmem [resolvable:$true] %s40
      %43 = dma.vmem_to_hbm [thread:$0]  %s41, 64, %s2, [#allocation4]
    $region17: #{tpu_custom_call.1} parent=1 // pred_fallthru
      _
    // Predicated region
    $region18: #{tpu_custom_call.1} parent=1 // pred_check
      _
    $region19: #{tpu_custom_call.1} parent=1 // pred_check_branch
      %45 = sbr.rel (0) target = $region21
    $region20: #{tpu_custom_call.1} parent=1 // pred_region
      %46 = dma.done [#allocation4], 64
    $region21: #{tpu_custom_call.1} parent=1 // pred_fallthru
      _
    %47 = vsyncpa [#allocation3], 1
    %48 = vsyncpa [#allocation4], 1

</llo_original>
